<compile_context>
chip_gen: v7x
topology: tpu7x:2x2x1
jax: 0.10.0
libtpu: 0.0.40
codegen_flags: <defaults>
</compile_context>

<pallas_src>
import jax
import jax.numpy as jnp
from jax import lax
from jax.experimental import pallas as pl
from jax.experimental.pallas import tpu as pltpu  # noqa: F401  (TPU backend)

block_size = 8   # max sequence length (size of the torch module's tril buffer)
n_embd = 32
head_size = 16

_MASKED = -1e30  # large finite negative: same result as -inf here, NaN-safe


def init_head_params(w_key, w_query, w_value):
    """One-time packing of the nn.Linear weights (param-init time, NOT per call):
      * transpose to (C, H) so the kernel right-multiplies x @ W,
      * fold the C**-0.5 attention scale into the Q projection, deleting the
        per-score multiply from the kernel.
    """
    C = w_key.shape[1]
    scale = float(C) ** -0.5      # matches the torch module: C ** (-0.5), C = n_embd
    return {
        "wq_t": jnp.asarray(w_query).T * scale,   # (C, H), scale folded in
        "wk_t": jnp.asarray(w_key).T,             # (C, H)
        "wv_t": jnp.asarray(w_value).T,           # (C, H)
    }


def make_attn_bias(B, T, dtype=jnp.float32):
    """Static block-diagonal causal mask as an additive bias, built once at init.

    Query i=(b,t) attends to j=(b,t') with t' <= t; cross-batch entries are
    masked, making flattened (B*T, B*T) attention exactly equivalent to
    per-batch causal attention (masked entries underflow to exactly 0 after
    exp, so they contribute nothing to the softmax sum or to p @ v)."""
    BT = B * T
    row = lax.broadcasted_iota(jnp.int32, (BT, BT), 0)
    col = lax.broadcasted_iota(jnp.int32, (BT, BT), 1)
    keep = (col <= row) & ((row // T) == (col // T))
    return jnp.where(keep, 0.0, _MASKED).astype(dtype)        # (BT, BT)


def _head_kernel(x_ref, wq_ref, wk_ref, wv_ref, bias_ref, o_ref):
    x = x_ref[...]                                            # (BT, C)

    # Three projections sharing x.  Separate dots (rather than one fused
    # (C,3H) matmul + 16-lane slices of its result) keep q/k/v vreg-aligned.
    # No operand astype: bf16 inputs hit the bf16 MXU path, accumulation f32.
    q = jnp.dot(x, wq_ref[...], preferred_element_type=jnp.float32)   # (BT, H)
    k = jnp.dot(x, wk_ref[...], preferred_element_type=jnp.float32)   # (BT, H)
    v = jnp.dot(x, wv_ref[...], preferred_element_type=jnp.float32)   # (BT, H)

    # Scores: contract on the H axis of both operands (scale already folded
    # into wq at init).  NOTE: whether Mosaic lowers this rhs-minor contraction
    # without inserting a k transpose is unverified — irrelevant at 16x16, but
    # check pl.lower_as_mlir before scaling T up.
    s = lax.dot_general(q, k, (((1,), (1,)), ((), ())),
                        preferred_element_type=jnp.float32)           # (BT, BT)
    s = s + bias_ref[...]            # precomputed block-diagonal causal bias

    # Numerically stable softmax; diagonal always kept -> row max is finite.
    s = s - jnp.max(s, axis=-1, keepdims=True)
    p = jnp.exp(s)
    p = p * pl.reciprocal(jnp.sum(p, axis=-1, keepdims=True), approx=True)

    # TODO(synk): nn.Dropout(0.1) is identity in eval mode; training-mode
    # dropout (pltpu.prng_seed / prng_random_bits based) intentionally omitted.

    out = jnp.dot(p, v, preferred_element_type=jnp.float32)           # (BT, H)
    # TODO(synk): a lane-dense (B, T*H)=(2,128) store would need a sublane->lane
    # reshape whose Mosaic lowering must first be verified with pl.lower_as_mlir;
    # the store is only 1 KB, so keep one contiguous (BT, H) slab for now.
    o_ref[...] = out.astype(o_ref.dtype)


def head_forward(embd_x, params, attn_bias):
    """embd_x: (B, T, C); params from init_head_params; attn_bias: (B*T, B*T)."""
    B, T, C = embd_x.shape
    H = params["wq_t"].shape[1]
    x2d = embd_x.reshape(B * T, C)   # free row-major reshape

    # Single gridless invocation: every operand lives whole in VMEM and is
    # DMA'd exactly once.
    # NOTE(v7x): for production B / multiple heads, reintroduce a grid axis
    # with dimension_semantics=("parallel", ...) so both TensorCores get work;
    # at B*T=16 one step is optimal on all generations.
    out2d = pl.pallas_call(
        _head_kernel,
        out_shape=jax.ShapeDtypeStruct((B * T, H), embd_x.dtype),
    )(x2d, params["wq_t"], params["wk_t"], params["wv_t"], attn_bias)

    return out2d.reshape(B, T, H)    # free row-major reshape


def head_reference(embd_x, w_key, w_query, w_value):
    """Pure-JAX reference replicating the torch forward (eval mode)."""
    B, T, C = embd_x.shape
    k = embd_x @ w_key.T
    q = embd_x @ w_query.T
    v = embd_x @ w_value.T
    wei = (q @ jnp.swapaxes(k, -2, -1)) * (C ** -0.5)
    tril = jnp.tril(jnp.ones((T, T), dtype=bool))
    wei = jnp.where(tril, wei, -jnp.inf)
    wei = jax.nn.softmax(wei, axis=-1)
    return wei @ v


if __name__ == "__main__":
    key = jax.random.PRNGKey(0)
    kx, kk, kq, kv = jax.random.split(key, 4)

    B, T, C, H = 2, block_size, n_embd, head_size
    embd_x = jax.random.normal(kx, (B, T, C), dtype=jnp.float32)

    # Deterministic "Linear" weights: shape (head_size, n_embd), no bias.
    bound = 1.0 / (C ** 0.5)
    w_key = jax.random.uniform(kk, (H, C), jnp.float32, -bound, bound)
    w_query = jax.random.uniform(kq, (H, C), jnp.float32, -bound, bound)
    w_value = jax.random.uniform(kv, (H, C), jnp.float32, -bound, bound)

    # One-time init: weight packing (scale folded into Q) + static mask bias.
    params = init_head_params(w_key, w_query, w_value)
    attn_bias = make_attn_bias(B, T)

    out = head_forward(embd_x, params, attn_bias)
    out = jax.block_until_ready(out)

    ref = head_reference(embd_x, w_key, w_query, w_value)
    assert out.shape == (B, T, H), out.shape
    # Tolerance accounts for the approximate (EUP) reciprocal in the softmax.
    assert jnp.allclose(out, ref, atol=5e-3, rtol=5e-3), "mismatch vs reference"

    print("KERNEL_OK")
</pallas_src>

<mosaic_0001>
module attributes {stable_mosaic.version = 11 : i64} {
  func.func @_head_kernel(%arg0: memref<16x32xf32, #tpu.memory_space<vmem>>, %arg1: memref<32x16xf32, #tpu.memory_space<vmem>>, %arg2: memref<32x16xf32, #tpu.memory_space<vmem>>, %arg3: memref<32x16xf32, #tpu.memory_space<vmem>>, %arg4: memref<16x16xf32, #tpu.memory_space<vmem>>, %arg5: memref<16x16xf32, #tpu.memory_space<vmem>>) attributes {dimension_semantics = [], scalar_prefetch = 0 : i64, scratch_operands = 0 : i64, tpu.core_type = #tpu.core_type<tc>} {
    %c0 = arith.constant 0 : index
    %c0_0 = arith.constant 0 : index
    %0 = vector.load %arg0[%c0, %c0_0] : memref<16x32xf32, #tpu.memory_space<vmem>>, vector<16x32xf32>
    %c0_1 = arith.constant 0 : index
    %c0_2 = arith.constant 0 : index
    %1 = vector.load %arg1[%c0_1, %c0_2] : memref<32x16xf32, #tpu.memory_space<vmem>>, vector<32x16xf32>
    %cst = arith.constant dense<0.000000e+00> : vector<16x16xf32>
    %2 = tpu.matmul %0, %1, %cst {dimension_numbers = #tpu.dot_dimension_numbers<[1], [0], [0], [1], [0, 0, 1, 1], [], []>} : vector<16x32xf32>, vector<32x16xf32>, vector<16x16xf32> -> vector<16x16xf32>
    %c0_3 = arith.constant 0 : index
    %c0_4 = arith.constant 0 : index
    %3 = vector.load %arg2[%c0_3, %c0_4] : memref<32x16xf32, #tpu.memory_space<vmem>>, vector<32x16xf32>
    %cst_5 = arith.constant dense<0.000000e+00> : vector<16x16xf32>
    %4 = tpu.matmul %0, %3, %cst_5 {dimension_numbers = #tpu.dot_dimension_numbers<[1], [0], [0], [1], [0, 0, 1, 1], [], []>} : vector<16x32xf32>, vector<32x16xf32>, vector<16x16xf32> -> vector<16x16xf32>
    %c0_6 = arith.constant 0 : index
    %c0_7 = arith.constant 0 : index
    %5 = vector.load %arg3[%c0_6, %c0_7] : memref<32x16xf32, #tpu.memory_space<vmem>>, vector<32x16xf32>
    %cst_8 = arith.constant dense<0.000000e+00> : vector<16x16xf32>
    %6 = tpu.matmul %0, %5, %cst_8 {dimension_numbers = #tpu.dot_dimension_numbers<[1], [0], [0], [1], [0, 0, 1, 1], [], []>} : vector<16x32xf32>, vector<32x16xf32>, vector<16x16xf32> -> vector<16x16xf32>
    %cst_9 = arith.constant dense<0.000000e+00> : vector<16x16xf32>
    %7 = tpu.matmul %2, %4, %cst_9 {dimension_numbers = #tpu.dot_dimension_numbers<[1], [1], [0], [0], [0, 0, 1, 0], [], []>} : vector<16x16xf32>, vector<16x16xf32>, vector<16x16xf32> -> vector<16x16xf32>
    %c0_10 = arith.constant 0 : index
    %c0_11 = arith.constant 0 : index
    %8 = vector.load %arg4[%c0_10, %c0_11] : memref<16x16xf32, #tpu.memory_space<vmem>>, vector<16x16xf32>
    %9 = arith.addf %7, %8 : vector<16x16xf32>
    %cst_12 = arith.constant dense<0xFF800000> : vector<16xf32>
    %10 = vector.multi_reduction <maximumf>, %9, %cst_12 [1] : vector<16x16xf32> to vector<16xf32>
    %11 = vector.shape_cast %10 : vector<16xf32> to vector<16x1xf32>
    %12 = vector.broadcast %11 : vector<16x1xf32> to vector<16x16xf32>
    %13 = arith.subf %9, %12 : vector<16x16xf32>
    %14 = math.exp %13 : vector<16x16xf32>
    %cst_13 = arith.constant dense<0.000000e+00> : vector<16xf32>
    %15 = vector.multi_reduction <add>, %14, %cst_13 [1] : vector<16x16xf32> to vector<16xf32>
    %16 = vector.shape_cast %15 : vector<16xf32> to vector<16x1xf32>
    %17 = tpu.reciprocal %16 {approx = true} : vector<16x1xf32> -> vector<16x1xf32>
    %18 = vector.broadcast %17 : vector<16x1xf32> to vector<16x16xf32>
    %19 = arith.mulf %14, %18 : vector<16x16xf32>
    %cst_14 = arith.constant dense<0.000000e+00> : vector<16x16xf32>
    %20 = tpu.matmul %19, %6, %cst_14 {dimension_numbers = #tpu.dot_dimension_numbers<[1], [0], [0], [1], [0, 0, 1, 1], [], []>} : vector<16x16xf32>, vector<16x16xf32>, vector<16x16xf32> -> vector<16x16xf32>
    %c0_15 = arith.constant 0 : index
    %c0_16 = arith.constant 0 : index
    %21 = vector.load %arg5[%c0_15, %c0_16] : memref<16x16xf32, #tpu.memory_space<vmem>>, vector<16x16xf32>
    tpu.vector_store %arg5[%c0_15, %c0_16], %20 {strides = array<i32>} : memref<16x16xf32, #tpu.memory_space<vmem>>, vector<16x16xf32>,
    return
  }
}

</mosaic_0001>

<llo_original>
// kernel: tpu_custom_call.1
$region0: #{tpu_custom_call.1}
  #allocation0 [shape = 'u32[]', space=smem, size = 0x4, offset = 0x4, fixed_abs, tag = 'smem constant byte address 0x4 - core index']
  #allocation1 [shape = 'u32[144,128]{1,0:T(1,128)}', space=vmem, size = 0x12000, scoped, tag = 'internal scratch']
  %s0 = inlined_call_operand.vmem [shape: f32[16,32], index: 0, kind: input, shape index: {}]
  %s1 = inlined_call_operand.vmem [shape: f32[32,16], index: 1, kind: input, shape index: {}]
  %s2 = inlined_call_operand.vmem [shape: f32[32,16], index: 2, kind: input, shape index: {}]
  %s3 = inlined_call_operand.vmem [shape: f32[32,16], index: 3, kind: input, shape index: {}]
  %s4 = inlined_call_operand.vmem [shape: f32[16,16], index: 4, kind: input, shape index: {}]
  %s5 = inlined_call_operand.hbm [shape: f32[16,16], index: 5, kind: output, shape index: {}]
  %s6 = sld [smem:[#allocation0]]
  $region30: #{tpu_custom_call.1} parent=0
    _
  %s8 = ssub.s32 1, %s6
  %s9 = scalar_select 0, %s8, %s6
  $region1: #{tpu_custom_call.1} parent=0
    #allocation2 [shape = 'u8[8192]{0}', space=vmem, size = 0x2000, scoped, tag = 'output window, operand 0, single buffered']
    #allocation3 [shape = 's32[1]{0}', space=sflag, size = 0x4, scoped, tag = 'scoped memory for tpu_custom_call.1']
    %10 = vsyncpa [#allocation3], 0
    // Predicated region
    $region2: #{tpu_custom_call.1} parent=1 // pred_check
      _
    $region3: #{tpu_custom_call.1} parent=1 // pred_check_branch
      %12 = sbr.rel (0) target = $region5
    $region4: #{tpu_custom_call.1} parent=1 // pred_region
      _
    $region5: #{tpu_custom_call.1} parent=1 // pred_fallthru
      _
    // Predicated region
    $region6: #{tpu_custom_call.1} parent=1 // pred_check
      _
    $region7: #{tpu_custom_call.1} parent=1 // pred_check_branch
      %14 = sbr.rel (0) target = $region9
    $region8: #{tpu_custom_call.1} parent=1 // pred_region
      _
    $region9: #{tpu_custom_call.1} parent=1 // pred_fallthru
      _
    // Predicated region
    $region10: #{tpu_custom_call.1} parent=1 // pred_check
      _
    $region11: #{tpu_custom_call.1} parent=1 // pred_check_branch
      %16 = sbr.rel (0) target = $region13
    $region12: #{tpu_custom_call.1} parent=1 // pred_region
      _
    $region13: #{tpu_custom_call.1} parent=1 // pred_fallthru
      _
    // Predicated region
    $region14: #{tpu_custom_call.1} parent=1 // pred_check
      _
    $region15: #{tpu_custom_call.1} parent=1 // pred_check_branch
      %18 = sbr.rel (0) target = $region17
    $region16: #{tpu_custom_call.1} parent=1 // pred_region
      _
    $region17: #{tpu_custom_call.1} parent=1 // pred_fallthru
      _
    // Predicated region
    $region18: #{tpu_custom_call.1} parent=1 // pred_check
      _
    $region19: #{tpu_custom_call.1} parent=1 // pred_check_branch
      %20 = sbr.rel (0) target = $region21
    $region20: #{tpu_custom_call.1} parent=1 // pred_region
      _
    $region21: #{tpu_custom_call.1} parent=1 // pred_fallthru
      _
    %v21 = vld [vmem:[%s0] sm:$0xff]
    %v22 = vld [vmem:[%s0 + $0x8] sm:$0xff]
    %v23 = vld [vmem:[%s1] sm:$0xff]
    %v24 = vld [vmem:[%s1 + $0x8] sm:$0xff]
    %v25 = vld [vmem:[%s1 + $0x10] sm:$0xff]
    %v26 = vld [vmem:[%s1 + $0x18] sm:$0xff]
    %vm27 = vcmask 261120
    %v29 = vsel %vm27, %v21, 0
    %v32 = vsel %vm27, %v22, 0
    %34 = vmatprep.subr.mxu0 0.0
    %35 = vmatpush1.msra.mxu0 %v23
    %36 = vmatprep.subr.mxu0 0.0
    %37 = vmatpush1.msra.mxu0 %v24
    %38 = vmatprep.subr.mxu0 0.0
    %39 = vmatpush1.msra.mxu0 %v25
    %40 = vmatprep.subr.mxu0 0.0
    %41 = vmatpush1.msra.mxu0 %v26
    %42 = vmatprep.subr.mxu0 0.0
    %43 = vmatpush1.msra.mxu0 0.0
    %44 = vmatprep.subr.mxu0 0.0
    %45 = vmatpush1.msra.mxu0 0.0
    %46 = vmatprep.subr.mxu0 0.0
    %47 = vmatpush1.msra.mxu0 0.0
    %48 = vmatprep.subr.mxu0 0.0
    %49 = vmatpush1.msra.mxu0 0.0
    %50 = vmatprep.subr.mxu0 0.0
    %51 = vmatpush1.msra.mxu0 0.0
    %52 = vmatprep.subr.mxu0 0.0
    %53 = vmatpush1.msra.mxu0 0.0
    %54 = vmatprep.subr.mxu0 0.0
    %55 = vmatpush1.msra.mxu0 0.0
    %56 = vmatprep.subr.mxu0 0.0
    %57 = vmatpush1.msra.mxu0 0.0
    %58 = vmatprep.subr.mxu0 0.0
    %59 = vmatpush1.msra.mxu0 0.0
    %60 = vmatprep.subr.mxu0 0.0
    %61 = vmatpush1.msra.mxu0 0.0
    %62 = vmatprep.subr.mxu0 0.0
    %63 = vmatpush1.msra.mxu0 0.0
    %64 = vmatprep.subr.mxu0 0.0
    %65 = vmatpush1.msra.mxu0 0.0
    %66 = vmatprep.subr.mxu0 0.0
    %67 = vmatpush1.msra.mxu0 0.0
    %68 = vmatprep.subr.mxu0 0.0
    %69 = vmatpush1.msra.mxu0 0.0
    %70 = vmatprep.subr.mxu0 0.0
    %71 = vmatpush1.msra.mxu0 0.0
    %72 = vmatprep.subr.mxu0 0.0
    %73 = vmatpush1.msra.mxu0 0.0
    %74 = vmatprep.subr.mxu0 0.0
    %75 = vmatpush1.msra.mxu0 0.0
    %76 = vmatprep.subr.mxu0 0.0
    %77 = vmatpush1.msra.mxu0 0.0
    %78 = vmatprep.subr.mxu0 0.0
    %79 = vmatpush1.msra.mxu0 0.0
    %80 = vmatprep.subr.mxu0 0.0
    %81 = vmatpush1.msra.mxu0 0.0
    %82 = vmatprep.subr.mxu0 0.0
    %83 = vmatpush1.msra.mxu0 0.0
    %84 = vmatprep.subr.mxu0 0.0
    %85 = vmatpush1.msra.mxu0 0.0
    %86 = vmatprep.subr.mxu0 0.0
    %87 = vmatpush1.msra.mxu0 0.0
    %88 = vmatprep.subr.mxu0 0.0
    %89 = vmatpush1.msra.mxu0 0.0
    %90 = vmatprep.subr.mxu0 0.0
    %91 = vmatpush1.msra.mxu0 0.0
    %92 = vmatprep.subr.mxu0 0.0
    %93 = vmatpush1.msra.mxu0 0.0
    %94 = vmatprep.subr.mxu0 0.0
    %95 = vmatpush1.msra.mxu0 0.0
    %96 = vmatprep.subr.mxu0 0.0
    %97 = vmatpush1.msra.mxu0 0.0
    %98 = vmatprep.mubr.f32.mxu0 0.0
    %99 = vmatmul.mubr.f32.gmra.mrb[0].mxu0 %v29
    %v100 = vpop.f32.mrb[0].mxu0
    %v101 = vadd.f32 0.0, %v100
    %v102 = vpop.f32.mrb[0].mxu0
    %103 = vmatprep.mubr.f32.mxu0 0.0
    %104 = vmatmul.mubr.f32.gmra.mrb[0].mxu0 %v32
    %v105 = vpop.f32.mrb[0].mxu0
    %v106 = vadd.f32 0.0, %v105
    %v107 = vpop.f32.mrb[0].mxu0
    %108 = vdwg.mxu0
    %v109 = vld [vmem:[%s2] sm:$0xff]
    %v110 = vld [vmem:[%s2 + $0x8] sm:$0xff]
    %v111 = vld [vmem:[%s2 + $0x10] sm:$0xff]
    %v112 = vld [vmem:[%s2 + $0x18] sm:$0xff]
    %113 = vmatprep.subr.mxu0 0.0
    %114 = vmatpush1.msra.mxu0 %v109
    %115 = vmatprep.subr.mxu0 0.0
    %116 = vmatpush1.msra.mxu0 %v110
    %117 = vmatprep.subr.mxu0 0.0
    %118 = vmatpush1.msra.mxu0 %v111
    %119 = vmatprep.subr.mxu0 0.0
    %120 = vmatpush1.msra.mxu0 %v112
    %121 = vmatprep.subr.mxu0 0.0
    %122 = vmatpush1.msra.mxu0 0.0
    %123 = vmatprep.subr.mxu0 0.0
    %124 = vmatpush1.msra.mxu0 0.0
    %125 = vmatprep.subr.mxu0 0.0
    %126 = vmatpush1.msra.mxu0 0.0
    %127 = vmatprep.subr.mxu0 0.0
    %128 = vmatpush1.msra.mxu0 0.0
    %129 = vmatprep.subr.mxu0 0.0
    %130 = vmatpush1.msra.mxu0 0.0
    %131 = vmatprep.subr.mxu0 0.0
    %132 = vmatpush1.msra.mxu0 0.0
    %133 = vmatprep.subr.mxu0 0.0
    %134 = vmatpush1.msra.mxu0 0.0
    %135 = vmatprep.subr.mxu0 0.0
    %136 = vmatpush1.msra.mxu0 0.0
    %137 = vmatprep.subr.mxu0 0.0
    %138 = vmatpush1.msra.mxu0 0.0
    %139 = vmatprep.subr.mxu0 0.0
    %140 = vmatpush1.msra.mxu0 0.0
    %141 = vmatprep.subr.mxu0 0.0
    %142 = vmatpush1.msra.mxu0 0.0
    %143 = vmatprep.subr.mxu0 0.0
    %144 = vmatpush1.msra.mxu0 0.0
    %145 = vmatprep.subr.mxu0 0.0
    %146 = vmatpush1.msra.mxu0 0.0
    %147 = vmatprep.subr.mxu0 0.0
    %148 = vmatpush1.msra.mxu0 0.0
    %149 = vmatprep.subr.mxu0 0.0
    %150 = vmatpush1.msra.mxu0 0.0
    %151 = vmatprep.subr.mxu0 0.0
    %152 = vmatpush1.msra.mxu0 0.0
    %153 = vmatprep.subr.mxu0 0.0
    %154 = vmatpush1.msra.mxu0 0.0
    %155 = vmatprep.subr.mxu0 0.0
    %156 = vmatpush1.msra.mxu0 0.0
    %157 = vmatprep.subr.mxu0 0.0
    %158 = vmatpush1.msra.mxu0 0.0
    %159 = vmatprep.subr.mxu0 0.0
    %160 = vmatpush1.msra.mxu0 0.0
    %161 = vmatprep.subr.mxu0 0.0
    %162 = vmatpush1.msra.mxu0 0.0
    %163 = vmatprep.subr.mxu0 0.0
    %164 = vmatpush1.msra.mxu0 0.0
    %165 = vmatprep.subr.mxu0 0.0
    %166 = vmatpush1.msra.mxu0 0.0
    %167 = vmatprep.subr.mxu0 0.0
    %168 = vmatpush1.msra.mxu0 0.0
    %169 = vmatprep.subr.mxu0 0.0
    %170 = vmatpush1.msra.mxu0 0.0
    %171 = vmatprep.subr.mxu0 0.0
    %172 = vmatpush1.msra.mxu0 0.0
    %173 = vmatprep.subr.mxu0 0.0
    %174 = vmatpush1.msra.mxu0 0.0
    %175 = vmatprep.subr.mxu0 0.0
    %176 = vmatpush1.msra.mxu0 0.0
    %177 = vmatprep.mubr.f32.mxu0 0.0
    %178 = vmatmul.mubr.f32.gmra.mrb[0].mxu0 %v29
    %v179 = vpop.f32.mrb[0].mxu0
    %v180 = vadd.f32 0.0, %v179
    %v181 = vpop.f32.mrb[0].mxu0
    %182 = vmatprep.mubr.f32.mxu0 0.0
    %183 = vmatmul.mubr.f32.gmra.mrb[0].mxu0 %v32
    %v184 = vpop.f32.mrb[0].mxu0
    %v185 = vadd.f32 0.0, %v184
    %v186 = vpop.f32.mrb[0].mxu0
    %187 = vdwg.mxu0
    %v188 = vld [vmem:[%s3] sm:$0xff]
    %v189 = vld [vmem:[%s3 + $0x8] sm:$0xff]
    %v190 = vld [vmem:[%s3 + $0x10] sm:$0xff]
    %v191 = vld [vmem:[%s3 + $0x18] sm:$0xff]
    %192 = vmatprep.subr.mxu0 0.0
    %193 = vmatpush1.msra.mxu0 %v188
    %194 = vmatprep.subr.mxu0 0.0
    %195 = vmatpush1.msra.mxu0 %v189
    %196 = vmatprep.subr.mxu0 0.0
    %197 = vmatpush1.msra.mxu0 %v190
    %198 = vmatprep.subr.mxu0 0.0
    %199 = vmatpush1.msra.mxu0 %v191
    %200 = vmatprep.subr.mxu0 0.0
    %201 = vmatpush1.msra.mxu0 0.0
    %202 = vmatprep.subr.mxu0 0.0
    %203 = vmatpush1.msra.mxu0 0.0
    %204 = vmatprep.subr.mxu0 0.0
    %205 = vmatpush1.msra.mxu0 0.0
    %206 = vmatprep.subr.mxu0 0.0
    %207 = vmatpush1.msra.mxu0 0.0
    %208 = vmatprep.subr.mxu0 0.0
    %209 = vmatpush1.msra.mxu0 0.0
    %210 = vmatprep.subr.mxu0 0.0
    %211 = vmatpush1.msra.mxu0 0.0
    %212 = vmatprep.subr.mxu0 0.0
    %213 = vmatpush1.msra.mxu0 0.0
    %214 = vmatprep.subr.mxu0 0.0
    %215 = vmatpush1.msra.mxu0 0.0
    %216 = vmatprep.subr.mxu0 0.0
    %217 = vmatpush1.msra.mxu0 0.0
    %218 = vmatprep.subr.mxu0 0.0
    %219 = vmatpush1.msra.mxu0 0.0
    %220 = vmatprep.subr.mxu0 0.0
    %221 = vmatpush1.msra.mxu0 0.0
    %222 = vmatprep.subr.mxu0 0.0
    %223 = vmatpush1.msra.mxu0 0.0
    %224 = vmatprep.subr.mxu0 0.0
    %225 = vmatpush1.msra.mxu0 0.0
    %226 = vmatprep.subr.mxu0 0.0
    %227 = vmatpush1.msra.mxu0 0.0
    %228 = vmatprep.subr.mxu0 0.0
    %229 = vmatpush1.msra.mxu0 0.0
    %230 = vmatprep.subr.mxu0 0.0
    %231 = vmatpush1.msra.mxu0 0.0
    %232 = vmatprep.subr.mxu0 0.0
    %233 = vmatpush1.msra.mxu0 0.0
    %234 = vmatprep.subr.mxu0 0.0
    %235 = vmatpush1.msra.mxu0 0.0
    %236 = vmatprep.subr.mxu0 0.0
    %237 = vmatpush1.msra.mxu0 0.0
    %238 = vmatprep.subr.mxu0 0.0
    %239 = vmatpush1.msra.mxu0 0.0
    %240 = vmatprep.subr.mxu0 0.0
    %241 = vmatpush1.msra.mxu0 0.0
    %242 = vmatprep.subr.mxu0 0.0
    %243 = vmatpush1.msra.mxu0 0.0
    %244 = vmatprep.subr.mxu0 0.0
    %245 = vmatpush1.msra.mxu0 0.0
    %246 = vmatprep.subr.mxu0 0.0
    %247 = vmatpush1.msra.mxu0 0.0
    %248 = vmatprep.subr.mxu0 0.0
    %249 = vmatpush1.msra.mxu0 0.0
    %250 = vmatprep.subr.mxu0 0.0
    %251 = vmatpush1.msra.mxu0 0.0
    %252 = vmatprep.subr.mxu0 0.0
    %253 = vmatpush1.msra.mxu0 0.0
    %254 = vmatprep.subr.mxu0 0.0
    %255 = vmatpush1.msra.mxu0 0.0
    %256 = vmatprep.mubr.f32.mxu0 0.0
    %257 = vmatmul.mubr.f32.gmra.mrb[0].mxu0 %v29
    %v258 = vpop.f32.mrb[0].mxu0
    %v259 = vadd.f32 0.0, %v258
    %v260 = vpop.f32.mrb[0].mxu0
    %261 = vmatprep.mubr.f32.mxu0 0.0
    %262 = vmatmul.mubr.f32.gmra.mrb[0].mxu0 %v32
    %v263 = vpop.f32.mrb[0].mxu0
    %v264 = vadd.f32 0.0, %v263
    %v265 = vpop.f32.mrb[0].mxu0
    %266 = vdwg.mxu0
    %v267 = vld [vmem:[%s4] sm:$0xff]
    %v268 = vld [vmem:[%s4 + $0x8] sm:$0xff]
    %vm269 = vcmask 130048
    %v271 = vsel %vm269, %v101, 0
    %v274 = vsel %vm269, %v106, 0
    %v277 = vsel %vm269, %v180, 0
    %v280 = vsel %vm269, %v185, 0
    %282 = vmatprep.subr.mxu0 0.0
    %283 = vmatpush1.xpose.msra.mxu0 %v277
    %284 = vmatprep.subr.mxu0 0.0
    %285 = vmatpush1.xpose.msra.mxu0 %v280
    %286 = vmatprep.subr.mxu0 0.0
    %287 = vmatpush1.xpose.msra.mxu0 0.0
    %288 = vmatprep.subr.mxu0 0.0
    %289 = vmatpush1.xpose.msra.mxu0 0.0
    %290 = vmatprep.subr.mxu0 0.0
    %291 = vmatpush1.xpose.msra.mxu0 0.0
    %292 = vmatprep.subr.mxu0 0.0
    %293 = vmatpush1.xpose.msra.mxu0 0.0
    %294 = vmatprep.subr.mxu0 0.0
    %295 = vmatpush1.xpose.msra.mxu0 0.0
    %296 = vmatprep.subr.mxu0 0.0
    %297 = vmatpush1.xpose.msra.mxu0 0.0
    %298 = vmatprep.subr.mxu0 0.0
    %299 = vmatpush1.xpose.msra.mxu0 0.0
    %300 = vmatprep.subr.mxu0 0.0
    %301 = vmatpush1.xpose.msra.mxu0 0.0
    %302 = vmatprep.subr.mxu0 0.0
    %303 = vmatpush1.xpose.msra.mxu0 0.0
    %304 = vmatprep.subr.mxu0 0.0
    %305 = vmatpush1.xpose.msra.mxu0 0.0
    %306 = vmatprep.subr.mxu0 0.0
    %307 = vmatpush1.xpose.msra.mxu0 0.0
    %308 = vmatprep.subr.mxu0 0.0
    %309 = vmatpush1.xpose.msra.mxu0 0.0
    %310 = vmatprep.subr.mxu0 0.0
    %311 = vmatpush1.xpose.msra.mxu0 0.0
    %312 = vmatprep.subr.mxu0 0.0
    %313 = vmatpush1.xpose.msra.mxu0 0.0
    %314 = vmatprep.subr.mxu0 0.0
    %315 = vmatpush1.xpose.msra.mxu0 0.0
    %316 = vmatprep.subr.mxu0 0.0
    %317 = vmatpush1.xpose.msra.mxu0 0.0
    %318 = vmatprep.subr.mxu0 0.0
    %319 = vmatpush1.xpose.msra.mxu0 0.0
    %320 = vmatprep.subr.mxu0 0.0
    %321 = vmatpush1.xpose.msra.mxu0 0.0
    %322 = vmatprep.subr.mxu0 0.0
    %323 = vmatpush1.xpose.msra.mxu0 0.0
    %324 = vmatprep.subr.mxu0 0.0
    %325 = vmatpush1.xpose.msra.mxu0 0.0
    %326 = vmatprep.subr.mxu0 0.0
    %327 = vmatpush1.xpose.msra.mxu0 0.0
    %328 = vmatprep.subr.mxu0 0.0
    %329 = vmatpush1.xpose.msra.mxu0 0.0
    %330 = vmatprep.subr.mxu0 0.0
    %331 = vmatpush1.xpose.msra.mxu0 0.0
    %332 = vmatprep.subr.mxu0 0.0
    %333 = vmatpush1.xpose.msra.mxu0 0.0
    %334 = vmatprep.subr.mxu0 0.0
    %335 = vmatpush1.xpose.msra.mxu0 0.0
    %336 = vmatprep.subr.mxu0 0.0
    %337 = vmatpush1.xpose.msra.mxu0 0.0
    %338 = vmatprep.subr.mxu0 0.0
    %339 = vmatpush1.xpose.msra.mxu0 0.0
    %340 = vmatprep.subr.mxu0 0.0
    %341 = vmatpush1.xpose.msra.mxu0 0.0
    %342 = vmatprep.subr.mxu0 0.0
    %343 = vmatpush1.xpose.msra.mxu0 0.0
    %344 = vmatprep.subr.mxu0 0.0
    %345 = vmatpush1.xpose.msra.mxu0 0.0
    %346 = vmatprep.mubr.f32.mxu0 0.0
    %347 = vmatmul.mubr.f32.gmra.mrb[0].mxu0 %v271
    %v348 = vpop.f32.mrb[0].mxu0
    %v349 = vadd.f32 %v267, %v348
    %v350 = vpop.f32.mrb[0].mxu0
    %351 = vmatprep.mubr.f32.mxu0 0.0
    %352 = vmatmul.mubr.f32.gmra.mrb[0].mxu0 %v274
    %v353 = vpop.f32.mrb[0].mxu0
    %v354 = vadd.f32 %v268, %v353
    %v355 = vpop.f32.mrb[0].mxu0
    %356 = vdwg.mxu0
    %v357 = vsel %vm269, %v349, -inf
    %358 = vmax.xlane.f32.xlu0 %v357
    %v359 = vpop.xlane.xlu0 %358
    %v360 = vsel %vm269, %v354, -inf
    %361 = vmax.xlane.f32.xlu0 %v360
    %v362 = vpop.xlane.xlu0 %361
    %v363 = vsub.f32 %v349, %v359
    %v364 = vsub.f32 %v354, %v362
    %v365 = vmul.f32 %v363, 1.442695
    %v366 = vpow.pop %v365
    %v367 = vmul.f32 %v364, 1.442695
    %v368 = vpow.pop %v367
    %v369 = vsel %vm269, %v366, 0.0
    %370 = vadd.xlane.f32.xlu0 %v369
    %v371 = vpop.xlane.xlu0 %370
    %v372 = vsel %vm269, %v368, 0.0
    %373 = vadd.xlane.f32.xlu0 %v372
    %v374 = vpop.xlane.xlu0 %373
    %v375 = vrcp.pop %v371
    %v376 = vrcp.pop %v374
    %v377 = vmul.f32 %v366, %v375
    %v378 = vmul.f32 %v368, %v376
    %v380 = vsel %vm269, %v377, 0
    %v383 = vsel %vm269, %v378, 0
    %385 = vmatprep.subr.mxu0 0.0
    %386 = vmatpush1.msra.mxu0 %v259
    %387 = vmatprep.subr.mxu0 0.0
    %388 = vmatpush1.msra.mxu0 %v264
    %389 = vmatprep.subr.mxu0 0.0
    %390 = vmatpush1.msra.mxu0 0.0
    %391 = vmatprep.subr.mxu0 0.0
    %392 = vmatpush1.msra.mxu0 0.0
    %393 = vmatprep.subr.mxu0 0.0
    %394 = vmatpush1.msra.mxu0 0.0
    %395 = vmatprep.subr.mxu0 0.0
    %396 = vmatpush1.msra.mxu0 0.0
    %397 = vmatprep.subr.mxu0 0.0
    %398 = vmatpush1.msra.mxu0 0.0
    %399 = vmatprep.subr.mxu0 0.0
    %400 = vmatpush1.msra.mxu0 0.0
    %401 = vmatprep.subr.mxu0 0.0
    %402 = vmatpush1.msra.mxu0 0.0
    %403 = vmatprep.subr.mxu0 0.0
    %404 = vmatpush1.msra.mxu0 0.0
    %405 = vmatprep.subr.mxu0 0.0
    %406 = vmatpush1.msra.mxu0 0.0
    %407 = vmatprep.subr.mxu0 0.0
    %408 = vmatpush1.msra.mxu0 0.0
    %409 = vmatprep.subr.mxu0 0.0
    %410 = vmatpush1.msra.mxu0 0.0
    %411 = vmatprep.subr.mxu0 0.0
    %412 = vmatpush1.msra.mxu0 0.0
    %413 = vmatprep.subr.mxu0 0.0
    %414 = vmatpush1.msra.mxu0 0.0
    %415 = vmatprep.subr.mxu0 0.0
    %416 = vmatpush1.msra.mxu0 0.0
    %417 = vmatprep.subr.mxu0 0.0
    %418 = vmatpush1.msra.mxu0 0.0
    %419 = vmatprep.subr.mxu0 0.0
    %420 = vmatpush1.msra.mxu0 0.0
    %421 = vmatprep.subr.mxu0 0.0
    %422 = vmatpush1.msra.mxu0 0.0
    %423 = vmatprep.subr.mxu0 0.0
    %424 = vmatpush1.msra.mxu0 0.0
    %425 = vmatprep.subr.mxu0 0.0
    %426 = vmatpush1.msra.mxu0 0.0
    %427 = vmatprep.subr.mxu0 0.0
    %428 = vmatpush1.msra.mxu0 0.0
    %429 = vmatprep.subr.mxu0 0.0
    %430 = vmatpush1.msra.mxu0 0.0
    %431 = vmatprep.subr.mxu0 0.0
    %432 = vmatpush1.msra.mxu0 0.0
    %433 = vmatprep.subr.mxu0 0.0
    %434 = vmatpush1.msra.mxu0 0.0
    %435 = vmatprep.subr.mxu0 0.0
    %436 = vmatpush1.msra.mxu0 0.0
    %437 = vmatprep.subr.mxu0 0.0
    %438 = vmatpush1.msra.mxu0 0.0
    %439 = vmatprep.subr.mxu0 0.0
    %440 = vmatpush1.msra.mxu0 0.0
    %441 = vmatprep.subr.mxu0 0.0
    %442 = vmatpush1.msra.mxu0 0.0
    %443 = vmatprep.subr.mxu0 0.0
    %444 = vmatpush1.msra.mxu0 0.0
    %445 = vmatprep.subr.mxu0 0.0
    %446 = vmatpush1.msra.mxu0 0.0
    %447 = vmatprep.subr.mxu0 0.0
    %448 = vmatpush1.msra.mxu0 0.0
    %449 = vmatprep.mubr.f32.mxu0 0.0
    %450 = vmatmul.mubr.f32.gmra.mrb[0].mxu0 %v380
    %v451 = vpop.f32.mrb[0].mxu0
    %v452 = vadd.f32 0.0, %v451
    %v453 = vpop.f32.mrb[0].mxu0
    %454 = vmatprep.mubr.f32.mxu0 0.0
    %455 = vmatmul.mubr.f32.gmra.mrb[0].mxu0 %v383
    %v456 = vpop.f32.mrb[0].mxu0
    %v457 = vadd.f32 0.0, %v456
    %v458 = vpop.f32.mrb[0].mxu0
    %459 = vdwg.mxu0
    %460 = vst.msk [vmem:[#allocation2] sm:$0xff] %vm269, %v452
    %461 = vst.msk [vmem:[#allocation2 + $0x8] sm:$0xff] %vm269, %v457
    // Predicated region
    $region22: #{tpu_custom_call.1} parent=1 // pred_check
      _
    $region23: #{tpu_custom_call.1} parent=1 // pred_check_branch
      %463 = sbr.rel (0) target = $region25
    $region24: #{tpu_custom_call.1} parent=1 // pred_region
      %s465 = ssub.s32 256, 256
      %466 = vsyncadd [#allocation3], %s465
      %s467 = sshll.u32 [#allocation2], 4
      %s468 = int_to_ptr.vmem [resolvable:$true] %s467
      %473 = dma.vmem_to_hbm [thread:$0]  %s468, 256, %s5, [#allocation3], 128, 128, 8
    $region25: #{tpu_custom_call.1} parent=1 // pred_fallthru
      _
    // Predicated region
    $region26: #{tpu_custom_call.1} parent=1 // pred_check
      _
    $region27: #{tpu_custom_call.1} parent=1 // pred_check_branch
      %475 = sbr.rel (0) target = $region29
    $region28: #{tpu_custom_call.1} parent=1 // pred_region
      %476 = dma.done [#allocation3], 256
    $region29: #{tpu_custom_call.1} parent=1 // pred_fallthru
      _
    %477 = vsyncpa [#allocation3], 1

</llo_original>
